<compile_context>
chip_gen: v7x
topology: tpu7x:2x2x1
jax: 0.10.0
libtpu: 0.0.40
codegen_flags: <defaults>
</compile_context>

<pallas_src>
import jax
import jax.numpy as jnp
from jax.experimental import pallas as pl
from jax.experimental.pallas import tpu as pltpu


def _r8(n):
    """Round up to a multiple of 8 (sublane tile) for aligned slab slices."""
    return ((n + 7) // 8) * 8


def addtask_lstm_kernel(x_ref, p_ref, s_ref, loss_ref, hc_ref):
    T, B, I = x_ref.shape
    G = p_ref.shape[1]
    H = G // 4
    off_whh = _r8(I)
    off_tail = off_whh + _r8(H)

    # --- unpack the params slab (rows are 8-aligned per section) ----------
    w_ih = p_ref[0:I, :]                                    # (I, 4H), g cols pre-scaled x2
    w_hh_b = p_ref[off_whh:off_whh + H, :].astype(jnp.bfloat16)  # (H, 4H), bf16 for 1-pass MXU
    b = p_ref[off_tail:off_tail + 1, :]                     # (1, 4H), g cols pre-scaled x2
    lin_row = p_ref[off_tail + 1:off_tail + 2, :]           # (1, 4H): [w_lin | b_lin | 0...]

    # --- unpack the state slab: [h0 | c0 | y | 0...] -----------------------
    h = s_ref[:, 0:H]                                       # (B, H)
    c = s_ref[:, H:2 * H]                                   # (B, H)
    y = s_ref[:, 2 * H:2 * H + 1]                           # (B, 1)

    # Hoist the loop-invariant input projection AND the bias out of the
    # recurrence: one (T*B, I) x (I, 4H) matmul + one (T*B, 4H) add, both off
    # the serial critical path.  (T, B, I) -> (T*B, I) only merges leading
    # dims, so the reshape is layout-free.
    x_all = x_ref[...].reshape(T * B, I)
    x_proj = jnp.dot(x_all, w_ih, preferred_element_type=jnp.float32) + b

    # Statically unrolled T-step recurrence: only h @ w_hh is loop-carried.
    for t in range(T):
        gates = (x_proj[t * B:(t + 1) * B, :]
                 + jnp.dot(h.astype(jnp.bfloat16), w_hh_b,
                           preferred_element_type=jnp.float32))  # (B, 4H) == one f32 vreg
        # Single EUP op per step over the whole vreg.  The g-gate columns of
        # the weights/bias were pre-scaled by 2, so tanh(z) = 2*sigmoid(2z)-1
        # recovers the candidate gate with a cheap VPU mul-add.
        sig = jax.nn.sigmoid(gates)
        i_g = sig[:, 0:H]
        f_g = sig[:, H:2 * H]
        g_g = 2.0 * sig[:, 2 * H:3 * H] - 1.0
        o_g = sig[:, 3 * H:4 * H]
        c = f_g * c + i_g * g_g
        h = o_g * jnp.tanh(c)

    # Packed hidden-state output: one (B, 2H) store instead of two tensors.
    hc_ref[:, 0:H] = h
    hc_ref[:, H:2 * H] = c

    # Linear(H, 1) head as a VPU multiply + lane reduce (no N=1 MXU matmul),
    # then MSE against y (squeeze + .t() on 1-D targets is a no-op).
    w_lin = lin_row[:, 0:H]                                 # (1, H)
    b_lin = lin_row[:, H:H + 1]                             # (1, 1)
    out = jnp.sum(h * w_lin, axis=-1, keepdims=True) + b_lin  # (B, 1)
    diff = out - y
    loss_ref[0, 0] = jnp.mean(diff * diff)


def pack_params(w_ih, w_hh, b, w_lin, b_lin):
    """One-time host-side packing of all parameters into a single lane-dense
    (rows, 4H) slab.  The g-gate columns [2H:3H) of w_ih/w_hh/b are pre-scaled
    by 2 so the kernel needs only one sigmoid per step."""
    I, G = w_ih.shape
    H = G // 4
    scale = jnp.ones((G,), jnp.float32).at[2 * H:3 * H].set(2.0)
    off_whh = _r8(I)
    off_tail = off_whh + _r8(H)
    n_rows = _r8(off_tail + 2)
    slab = jnp.zeros((n_rows, G), jnp.float32)
    slab = slab.at[0:I, :].set(w_ih * scale)
    slab = slab.at[off_whh:off_whh + H, :].set(w_hh * scale)
    slab = slab.at[off_tail, :].set((b * scale).reshape(G))
    lin_row = jnp.zeros((G,), jnp.float32)
    lin_row = lin_row.at[0:H].set(w_lin.reshape(H))
    lin_row = lin_row.at[H].set(b_lin.reshape(()))
    slab = slab.at[off_tail + 1, :].set(lin_row)
    return slab


def pack_state(h0, c0, y):
    """Per-call packing of (h0, c0, y) into one (B, 4H) = single-vreg slab."""
    B, H = h0.shape
    G = 4 * H
    s = jnp.zeros((B, G), jnp.float32)
    s = s.at[:, 0:H].set(h0)
    s = s.at[:, H:2 * H].set(c0)
    s = s.at[:, 2 * H].set(y.reshape(B))
    return s


def addtask_forward(x, y, h0, c0, params_slab):
    """Returns (loss, (h_n, c_n)) matching AddTaskModel.forward semantics."""
    B, H = h0.shape
    state_slab = pack_state(h0, c0, y)
    vmem = pl.BlockSpec(memory_space=pltpu.MemorySpace.VMEM)
    smem = pl.BlockSpec(memory_space=pltpu.MemorySpace.SMEM)
    # No grid: the whole problem stays VMEM-resident in one invocation (3 input
    # DMAs + 2 outputs).  For throughput over many sequences, add a leading
    # "parallel" grid axis over sequences (weights index_map -> block 0) so the
    # pipeline overlaps the next sequence's DMA and v7x's second TC is used.
    loss, hc = pl.pallas_call(
        addtask_lstm_kernel,
        out_shape=(jax.ShapeDtypeStruct((1, 1), jnp.float32),
                   jax.ShapeDtypeStruct((B, 2 * H), jnp.float32)),
        in_specs=[vmem, vmem, vmem],
        out_specs=(smem, vmem),
    )(x, params_slab, state_slab)
    # hidden tuple in PyTorch shape convention (1, B, H)
    h_n = hc[:, 0:H][None, :, :]
    c_n = hc[:, H:2 * H][None, :, :]
    return loss[0, 0], (h_n, c_n)


def init_params(key, input_size, hidden_size):
    """Deterministic parameter init matching the PyTorch module's __init__."""
    H = hidden_size
    k = 1.0 / jnp.sqrt(H)
    ks = jax.random.split(key, 7)
    # nn.LSTM default: uniform(-1/sqrt(H), 1/sqrt(H)) for all weights/biases.
    w_ih = jax.random.uniform(ks[0], (input_size, 4 * H), jnp.float32, -k, k)
    w_hh = jax.random.uniform(ks[1], (H, 4 * H), jnp.float32, -k, k)
    b_ih = jax.random.uniform(ks[2], (1, 4 * H), jnp.float32, -k, k)
    b_hh = jax.random.uniform(ks[3], (1, 4 * H), jnp.float32, -k, k)
    b = b_ih + b_hh
    # nn.Linear(H, 1) with xavier_normal_ on the weight (std = sqrt(2/(H+1))),
    # kept in PyTorch (1, H) layout for the VPU head.
    std = jnp.sqrt(2.0 / (H + 1))
    w_lin = jax.random.normal(ks[4], (1, H), jnp.float32) * std
    # nn.Linear default bias init: uniform(-1/sqrt(fan_in), 1/sqrt(fan_in)).
    kb = 1.0 / jnp.sqrt(H)
    b_lin = jax.random.uniform(ks[5], (1, 1), jnp.float32, -kb, kb)
    return w_ih, w_hh, b, w_lin, b_lin


if __name__ == "__main__":
    # Add-task shapes: seq=8, batch=8, input=2 (value + marker), hidden=32.
    T, B, I, H = 8, 8, 2, 32

    key = jax.random.PRNGKey(0)
    k_x, k_y, k_p = jax.random.split(key, 3)

    x = jax.random.normal(k_x, (T, B, I), jnp.float32)
    y = jax.random.normal(k_y, (B, 1), jnp.float32)
    # init_hidden(bsz): zeros of shape (1, B, H) for both h and c.
    h0 = jnp.zeros((B, H), jnp.float32)
    c0 = jnp.zeros((B, H), jnp.float32)

    w_ih, w_hh, b, w_lin, b_lin = init_params(k_p, I, H)
    params_slab = pack_params(w_ih, w_hh, b, w_lin, b_lin)  # one-time host-side packing

    loss, (h_n, c_n) = addtask_forward(x, y, h0, c0, params_slab)
    jax.block_until_ready((loss, h_n, c_n))

    assert h_n.shape == (1, B, H) and c_n.shape == (1, B, H) and loss.shape == ()
    print("KERNEL_OK")
</pallas_src>

<mosaic_0001>
module attributes {stable_mosaic.version = 11 : i64} {
  func.func @addtask_lstm_kernel(%arg0: memref<8x8x2xf32, #tpu.memory_space<vmem>>, %arg1: memref<48x128xf32, #tpu.memory_space<vmem>>, %arg2: memref<8x128xf32, #tpu.memory_space<vmem>>, %arg3: memref<1x1xf32, #tpu.memory_space<smem>>, %arg4: memref<8x64xf32, #tpu.memory_space<vmem>>) attributes {dimension_semantics = [], scalar_prefetch = 0 : i64, scratch_operands = 0 : i64, tpu.core_type = #tpu.core_type<tc>} {
    %c0 = arith.constant 0 : index
    %c0_0 = arith.constant 0 : index
    %0 = vector.load %arg1[%c0, %c0_0] : memref<48x128xf32, #tpu.memory_space<vmem>>, vector<2x128xf32>
    %c8 = arith.constant 8 : index
    %c0_1 = arith.constant 0 : index
    %1 = vector.load %arg1[%c8, %c0_1] : memref<48x128xf32, #tpu.memory_space<vmem>>, vector<32x128xf32>
    %2 = arith.truncf %1 : vector<32x128xf32> to vector<32x128xbf16>
    %c40 = arith.constant 40 : index
    %c0_2 = arith.constant 0 : index
    %3 = vector.load %arg1[%c40, %c0_2] : memref<48x128xf32, #tpu.memory_space<vmem>>, vector<1x128xf32>
    %c41 = arith.constant 41 : index
    %c0_3 = arith.constant 0 : index
    %4 = vector.load %arg1[%c41, %c0_3] : memref<48x128xf32, #tpu.memory_space<vmem>>, vector<1x128xf32>
    %c0_4 = arith.constant 0 : index
    %c0_5 = arith.constant 0 : index
    %5 = vector.load %arg2[%c0_4, %c0_5] : memref<8x128xf32, #tpu.memory_space<vmem>>, vector<8x32xf32>
    %c0_6 = arith.constant 0 : index
    %c32 = arith.constant 32 : index
    %6 = vector.load %arg2[%c0_6, %c32] : memref<8x128xf32, #tpu.memory_space<vmem>>, vector<8x32xf32>
    %c0_7 = arith.constant 0 : index
    %c64 = arith.constant 64 : index
    %7 = vector.load %arg2[%c0_7, %c64] : memref<8x128xf32, #tpu.memory_space<vmem>>, vector<8x1xf32>
    %c0_8 = arith.constant 0 : index
    %c0_9 = arith.constant 0 : index
    %c0_10 = arith.constant 0 : index
    %8 = vector.load %arg0[%c0_8, %c0_9, %c0_10] : memref<8x8x2xf32, #tpu.memory_space<vmem>>, vector<8x8x2xf32>
    %9 = vector.shape_cast %8 : vector<8x8x2xf32> to vector<64x2xf32>
    %cst = arith.constant dense<0.000000e+00> : vector<64x128xf32>
    %10 = tpu.matmul %9, %0, %cst {dimension_numbers = #tpu.dot_dimension_numbers<[1], [0], [0], [1], [0, 0, 1, 1], [], []>} : vector<64x2xf32>, vector<2x128xf32>, vector<64x128xf32> -> vector<64x128xf32>
    %11 = vector.broadcast %3 : vector<1x128xf32> to vector<64x128xf32>
    %12 = arith.addf %10, %11 : vector<64x128xf32>
    %13 = vector.extract_strided_slice %12 {offsets = [0, 0], sizes = [8, 128], strides = [1, 1]} : vector<64x128xf32> to vector<8x128xf32>
    %14 = arith.truncf %5 : vector<8x32xf32> to vector<8x32xbf16>
    %cst_11 = arith.constant dense<0.000000e+00> : vector<8x128xf32>
    %15 = tpu.matmul %14, %2, %cst_11 {dimension_numbers = #tpu.dot_dimension_numbers<[1], [0], [0], [1], [0, 0, 1, 1], [], []>} : vector<8x32xbf16>, vector<32x128xbf16>, vector<8x128xf32> -> vector<8x128xf32>
    %16 = arith.addf %13, %15 : vector<8x128xf32>
    %17 = arith.negf %16 : vector<8x128xf32>
    %18 = math.exp %17 : vector<8x128xf32>
    %cst_12 = arith.constant 1.000000e+00 : f32
    %19 = vector.broadcast %cst_12 : f32 to vector<8x128xf32>
    %20 = arith.addf %19, %18 : vector<8x128xf32>
    %21 = arith.divf %19, %20 : vector<8x128xf32>
    %22 = vector.extract_strided_slice %21 {offsets = [0, 0], sizes = [8, 32], strides = [1, 1]} : vector<8x128xf32> to vector<8x32xf32>
    %23 = vector.extract_strided_slice %21 {offsets = [0, 32], sizes = [8, 32], strides = [1, 1]} : vector<8x128xf32> to vector<8x32xf32>
    %24 = vector.extract_strided_slice %21 {offsets = [0, 64], sizes = [8, 32], strides = [1, 1]} : vector<8x128xf32> to vector<8x32xf32>
    %cst_13 = arith.constant 2.000000e+00 : f32
    %25 = vector.broadcast %cst_13 : f32 to vector<8x32xf32>
    %26 = arith.mulf %25, %24 : vector<8x32xf32>
    %cst_14 = arith.constant 1.000000e+00 : f32
    %27 = vector.broadcast %cst_14 : f32 to vector<8x32xf32>
    %28 = arith.subf %26, %27 : vector<8x32xf32>
    %29 = vector.extract_strided_slice %21 {offsets = [0, 96], sizes = [8, 32], strides = [1, 1]} : vector<8x128xf32> to vector<8x32xf32>
    %30 = arith.mulf %23, %6 : vector<8x32xf32>
    %31 = arith.mulf %22, %28 : vector<8x32xf32>
    %32 = arith.addf %30, %31 : vector<8x32xf32>
    %33 = math.tanh %32 : vector<8x32xf32>
    %34 = arith.mulf %29, %33 : vector<8x32xf32>
    %35 = vector.extract_strided_slice %12 {offsets = [8, 0], sizes = [8, 128], strides = [1, 1]} : vector<64x128xf32> to vector<8x128xf32>
    %36 = arith.truncf %34 : vector<8x32xf32> to vector<8x32xbf16>
    %cst_15 = arith.constant dense<0.000000e+00> : vector<8x128xf32>
    %37 = tpu.matmul %36, %2, %cst_15 {dimension_numbers = #tpu.dot_dimension_numbers<[1], [0], [0], [1], [0, 0, 1, 1], [], []>} : vector<8x32xbf16>, vector<32x128xbf16>, vector<8x128xf32> -> vector<8x128xf32>
    %38 = arith.addf %35, %37 : vector<8x128xf32>
    %39 = arith.negf %38 : vector<8x128xf32>
    %40 = math.exp %39 : vector<8x128xf32>
    %cst_16 = arith.constant 1.000000e+00 : f32
    %41 = vector.broadcast %cst_16 : f32 to vector<8x128xf32>
    %42 = arith.addf %41, %40 : vector<8x128xf32>
    %43 = arith.divf %41, %42 : vector<8x128xf32>
    %44 = vector.extract_strided_slice %43 {offsets = [0, 0], sizes = [8, 32], strides = [1, 1]} : vector<8x128xf32> to vector<8x32xf32>
    %45 = vector.extract_strided_slice %43 {offsets = [0, 32], sizes = [8, 32], strides = [1, 1]} : vector<8x128xf32> to vector<8x32xf32>
    %46 = vector.extract_strided_slice %43 {offsets = [0, 64], sizes = [8, 32], strides = [1, 1]} : vector<8x128xf32> to vector<8x32xf32>
    %cst_17 = arith.constant 2.000000e+00 : f32
    %47 = vector.broadcast %cst_17 : f32 to vector<8x32xf32>
    %48 = arith.mulf %47, %46 : vector<8x32xf32>
    %cst_18 = arith.constant 1.000000e+00 : f32
    %49 = vector.broadcast %cst_18 : f32 to vector<8x32xf32>
    %50 = arith.subf %48, %49 : vector<8x32xf32>
    %51 = vector.extract_strided_slice %43 {offsets = [0, 96], sizes = [8, 32], strides = [1, 1]} : vector<8x128xf32> to vector<8x32xf32>
    %52 = arith.mulf %45, %32 : vector<8x32xf32>
    %53 = arith.mulf %44, %50 : vector<8x32xf32>
    %54 = arith.addf %52, %53 : vector<8x32xf32>
    %55 = math.tanh %54 : vector<8x32xf32>
    %56 = arith.mulf %51, %55 : vector<8x32xf32>
    %57 = vector.extract_strided_slice %12 {offsets = [16, 0], sizes = [8, 128], strides = [1, 1]} : vector<64x128xf32> to vector<8x128xf32>
    %58 = arith.truncf %56 : vector<8x32xf32> to vector<8x32xbf16>
    %cst_19 = arith.constant dense<0.000000e+00> : vector<8x128xf32>
    %59 = tpu.matmul %58, %2, %cst_19 {dimension_numbers = #tpu.dot_dimension_numbers<[1], [0], [0], [1], [0, 0, 1, 1], [], []>} : vector<8x32xbf16>, vector<32x128xbf16>, vector<8x128xf32> -> vector<8x128xf32>
    %60 = arith.addf %57, %59 : vector<8x128xf32>
    %61 = arith.negf %60 : vector<8x128xf32>
    %62 = math.exp %61 : vector<8x128xf32>
    %cst_20 = arith.constant 1.000000e+00 : f32
    %63 = vector.broadcast %cst_20 : f32 to vector<8x128xf32>
    %64 = arith.addf %63, %62 : vector<8x128xf32>
    %65 = arith.divf %63, %64 : vector<8x128xf32>
    %66 = vector.extract_strided_slice %65 {offsets = [0, 0], sizes = [8, 32], strides = [1, 1]} : vector<8x128xf32> to vector<8x32xf32>
    %67 = vector.extract_strided_slice %65 {offsets = [0, 32], sizes = [8, 32], strides = [1, 1]} : vector<8x128xf32> to vector<8x32xf32>
    %68 = vector.extract_strided_slice %65 {offsets = [0, 64], sizes = [8, 32], strides = [1, 1]} : vector<8x128xf32> to vector<8x32xf32>
    %cst_21 = arith.constant 2.000000e+00 : f32
    %69 = vector.broadcast %cst_21 : f32 to vector<8x32xf32>
    %70 = arith.mulf %69, %68 : vector<8x32xf32>
    %cst_22 = arith.constant 1.000000e+00 : f32
    %71 = vector.broadcast %cst_22 : f32 to vector<8x32xf32>
    %72 = arith.subf %70, %71 : vector<8x32xf32>
    %73 = vector.extract_strided_slice %65 {offsets = [0, 96], sizes = [8, 32], strides = [1, 1]} : vector<8x128xf32> to vector<8x32xf32>
    %74 = arith.mulf %67, %54 : vector<8x32xf32>
    %75 = arith.mulf %66, %72 : vector<8x32xf32>
    %76 = arith.addf %74, %75 : vector<8x32xf32>
    %77 = math.tanh %76 : vector<8x32xf32>
    %78 = arith.mulf %73, %77 : vector<8x32xf32>
    %79 = vector.extract_strided_slice %12 {offsets = [24, 0], sizes = [8, 128], strides = [1, 1]} : vector<64x128xf32> to vector<8x128xf32>
    %80 = arith.truncf %78 : vector<8x32xf32> to vector<8x32xbf16>
    %cst_23 = arith.constant dense<0.000000e+00> : vector<8x128xf32>
    %81 = tpu.matmul %80, %2, %cst_23 {dimension_numbers = #tpu.dot_dimension_numbers<[1], [0], [0], [1], [0, 0, 1, 1], [], []>} : vector<8x32xbf16>, vector<32x128xbf16>, vector<8x128xf32> -> vector<8x128xf32>
    %82 = arith.addf %79, %81 : vector<8x128xf32>
    %83 = arith.negf %82 : vector<8x128xf32>
    %84 = math.exp %83 : vector<8x128xf32>
    %cst_24 = arith.constant 1.000000e+00 : f32
    %85 = vector.broadcast %cst_24 : f32 to vector<8x128xf32>
    %86 = arith.addf %85, %84 : vector<8x128xf32>
    %87 = arith.divf %85, %86 : vector<8x128xf32>
    %88 = vector.extract_strided_slice %87 {offsets = [0, 0], sizes = [8, 32], strides = [1, 1]} : vector<8x128xf32> to vector<8x32xf32>
    %89 = vector.extract_strided_slice %87 {offsets = [0, 32], sizes = [8, 32], strides = [1, 1]} : vector<8x128xf32> to vector<8x32xf32>
    %90 = vector.extract_strided_slice %87 {offsets = [0, 64], sizes = [8, 32], strides = [1, 1]} : vector<8x128xf32> to vector<8x32xf32>
    %cst_25 = arith.constant 2.000000e+00 : f32
    %91 = vector.broadcast %cst_25 : f32 to vector<8x32xf32>
    %92 = arith.mulf %91, %90 : vector<8x32xf32>
    %cst_26 = arith.constant 1.000000e+00 : f32
    %93 = vector.broadcast %cst_26 : f32 to vector<8x32xf32>
    %94 = arith.subf %92, %93 : vector<8x32xf32>
    %95 = vector.extract_strided_slice %87 {offsets = [0, 96], sizes = [8, 32], strides = [1, 1]} : vector<8x128xf32> to vector<8x32xf32>
    %96 = arith.mulf %89, %76 : vector<8x32xf32>
    %97 = arith.mulf %88, %94 : vector<8x32xf32>
    %98 = arith.addf %96, %97 : vector<8x32xf32>
    %99 = math.tanh %98 : vector<8x32xf32>
    %100 = arith.mulf %95, %99 : vector<8x32xf32>
    %101 = vector.extract_strided_slice %12 {offsets = [32, 0], sizes = [8, 128], strides = [1, 1]} : vector<64x128xf32> to vector<8x128xf32>
    %102 = arith.truncf %100 : vector<8x32xf32> to vector<8x32xbf16>
    %cst_27 = arith.constant dense<0.000000e+00> : vector<8x128xf32>
    %103 = tpu.matmul %102, %2, %cst_27 {dimension_numbers = #tpu.dot_dimension_numbers<[1], [0], [0], [1], [0, 0, 1, 1], [], []>} : vector<8x32xbf16>, vector<32x128xbf16>, vector<8x128xf32> -> vector<8x128xf32>
    %104 = arith.addf %101, %103 : vector<8x128xf32>
    %105 = arith.negf %104 : vector<8x128xf32>
    %106 = math.exp %105 : vector<8x128xf32>
    %cst_28 = arith.constant 1.000000e+00 : f32
    %107 = vector.broadcast %cst_28 : f32 to vector<8x128xf32>
    %108 = arith.addf %107, %106 : vector<8x128xf32>
    %109 = arith.divf %107, %108 : vector<8x128xf32>
    %110 = vector.extract_strided_slice %109 {offsets = [0, 0], sizes = [8, 32], strides = [1, 1]} : vector<8x128xf32> to vector<8x32xf32>
    %111 = vector.extract_strided_slice %109 {offsets = [0, 32], sizes = [8, 32], strides = [1, 1]} : vector<8x128xf32> to vector<8x32xf32>
    %112 = vector.extract_strided_slice %109 {offsets = [0, 64], sizes = [8, 32], strides = [1, 1]} : vector<8x128xf32> to vector<8x32xf32>
    %cst_29 = arith.constant 2.000000e+00 : f32
    %113 = vector.broadcast %cst_29 : f32 to vector<8x32xf32>
    %114 = arith.mulf %113, %112 : vector<8x32xf32>
    %cst_30 = arith.constant 1.000000e+00 : f32
    %115 = vector.broadcast %cst_30 : f32 to vector<8x32xf32>
    %116 = arith.subf %114, %115 : vector<8x32xf32>
    %117 = vector.extract_strided_slice %109 {offsets = [0, 96], sizes = [8, 32], strides = [1, 1]} : vector<8x128xf32> to vector<8x32xf32>
    %118 = arith.mulf %111, %98 : vector<8x32xf32>
    %119 = arith.mulf %110, %116 : vector<8x32xf32>
    %120 = arith.addf %118, %119 : vector<8x32xf32>
    %121 = math.tanh %120 : vector<8x32xf32>
    %122 = arith.mulf %117, %121 : vector<8x32xf32>
    %123 = vector.extract_strided_slice %12 {offsets = [40, 0], sizes = [8, 128], strides = [1, 1]} : vector<64x128xf32> to vector<8x128xf32>
    %124 = arith.truncf %122 : vector<8x32xf32> to vector<8x32xbf16>
    %cst_31 = arith.constant dense<0.000000e+00> : vector<8x128xf32>
    %125 = tpu.matmul %124, %2, %cst_31 {dimension_numbers = #tpu.dot_dimension_numbers<[1], [0], [0], [1], [0, 0, 1, 1], [], []>} : vector<8x32xbf16>, vector<32x128xbf16>, vector<8x128xf32> -> vector<8x128xf32>
    %126 = arith.addf %123, %125 : vector<8x128xf32>
    %127 = arith.negf %126 : vector<8x128xf32>
    %128 = math.exp %127 : vector<8x128xf32>
    %cst_32 = arith.constant 1.000000e+00 : f32
    %129 = vector.broadcast %cst_32 : f32 to vector<8x128xf32>
    %130 = arith.addf %129, %128 : vector<8x128xf32>
    %131 = arith.divf %129, %130 : vector<8x128xf32>
    %132 = vector.extract_strided_slice %131 {offsets = [0, 0], sizes = [8, 32], strides = [1, 1]} : vector<8x128xf32> to vector<8x32xf32>
    %133 = vector.extract_strided_slice %131 {offsets = [0, 32], sizes = [8, 32], strides = [1, 1]} : vector<8x128xf32> to vector<8x32xf32>
    %134 = vector.extract_strided_slice %131 {offsets = [0, 64], sizes = [8, 32], strides = [1, 1]} : vector<8x128xf32> to vector<8x32xf32>
    %cst_33 = arith.constant 2.000000e+00 : f32
    %135 = vector.broadcast %cst_33 : f32 to vector<8x32xf32>
    %136 = arith.mulf %135, %134 : vector<8x32xf32>
    %cst_34 = arith.constant 1.000000e+00 : f32
    %137 = vector.broadcast %cst_34 : f32 to vector<8x32xf32>
    %138 = arith.subf %136, %137 : vector<8x32xf32>
    %139 = vector.extract_strided_slice %131 {offsets = [0, 96], sizes = [8, 32], strides = [1, 1]} : vector<8x128xf32> to vector<8x32xf32>
    %140 = arith.mulf %133, %120 : vector<8x32xf32>
    %141 = arith.mulf %132, %138 : vector<8x32xf32>
    %142 = arith.addf %140, %141 : vector<8x32xf32>
    %143 = math.tanh %142 : vector<8x32xf32>
    %144 = arith.mulf %139, %143 : vector<8x32xf32>
    %145 = vector.extract_strided_slice %12 {offsets = [48, 0], sizes = [8, 128], strides = [1, 1]} : vector<64x128xf32> to vector<8x128xf32>
    %146 = arith.truncf %144 : vector<8x32xf32> to vector<8x32xbf16>
    %cst_35 = arith.constant dense<0.000000e+00> : vector<8x128xf32>
    %147 = tpu.matmul %146, %2, %cst_35 {dimension_numbers = #tpu.dot_dimension_numbers<[1], [0], [0], [1], [0, 0, 1, 1], [], []>} : vector<8x32xbf16>, vector<32x128xbf16>, vector<8x128xf32> -> vector<8x128xf32>
    %148 = arith.addf %145, %147 : vector<8x128xf32>
    %149 = arith.negf %148 : vector<8x128xf32>
    %150 = math.exp %149 : vector<8x128xf32>
    %cst_36 = arith.constant 1.000000e+00 : f32
    %151 = vector.broadcast %cst_36 : f32 to vector<8x128xf32>
    %152 = arith.addf %151, %150 : vector<8x128xf32>
    %153 = arith.divf %151, %152 : vector<8x128xf32>
    %154 = vector.extract_strided_slice %153 {offsets = [0, 0], sizes = [8, 32], strides = [1, 1]} : vector<8x128xf32> to vector<8x32xf32>
    %155 = vector.extract_strided_slice %153 {offsets = [0, 32], sizes = [8, 32], strides = [1, 1]} : vector<8x128xf32> to vector<8x32xf32>
    %156 = vector.extract_strided_slice %153 {offsets = [0, 64], sizes = [8, 32], strides = [1, 1]} : vector<8x128xf32> to vector<8x32xf32>
    %cst_37 = arith.constant 2.000000e+00 : f32
    %157 = vector.broadcast %cst_37 : f32 to vector<8x32xf32>
    %158 = arith.mulf %157, %156 : vector<8x32xf32>
    %cst_38 = arith.constant 1.000000e+00 : f32
    %159 = vector.broadcast %cst_38 : f32 to vector<8x32xf32>
    %160 = arith.subf %158, %159 : vector<8x32xf32>
    %161 = vector.extract_strided_slice %153 {offsets = [0, 96], sizes = [8, 32], strides = [1, 1]} : vector<8x128xf32> to vector<8x32xf32>
    %162 = arith.mulf %155, %142 : vector<8x32xf32>
    %163 = arith.mulf %154, %160 : vector<8x32xf32>
    %164 = arith.addf %162, %163 : vector<8x32xf32>
    %165 = math.tanh %164 : vector<8x32xf32>
    %166 = arith.mulf %161, %165 : vector<8x32xf32>
    %167 = vector.extract_strided_slice %12 {offsets = [56, 0], sizes = [8, 128], strides = [1, 1]} : vector<64x128xf32> to vector<8x128xf32>
    %168 = arith.truncf %166 : vector<8x32xf32> to vector<8x32xbf16>
    %cst_39 = arith.constant dense<0.000000e+00> : vector<8x128xf32>
    %169 = tpu.matmul %168, %2, %cst_39 {dimension_numbers = #tpu.dot_dimension_numbers<[1], [0], [0], [1], [0, 0, 1, 1], [], []>} : vector<8x32xbf16>, vector<32x128xbf16>, vector<8x128xf32> -> vector<8x128xf32>
    %170 = arith.addf %167, %169 : vector<8x128xf32>
    %171 = arith.negf %170 : vector<8x128xf32>
    %172 = math.exp %171 : vector<8x128xf32>
    %cst_40 = arith.constant 1.000000e+00 : f32
    %173 = vector.broadcast %cst_40 : f32 to vector<8x128xf32>
    %174 = arith.addf %173, %172 : vector<8x128xf32>
    %175 = arith.divf %173, %174 : vector<8x128xf32>
    %176 = vector.extract_strided_slice %175 {offsets = [0, 0], sizes = [8, 32], strides = [1, 1]} : vector<8x128xf32> to vector<8x32xf32>
    %177 = vector.extract_strided_slice %175 {offsets = [0, 32], sizes = [8, 32], strides = [1, 1]} : vector<8x128xf32> to vector<8x32xf32>
    %178 = vector.extract_strided_slice %175 {offsets = [0, 64], sizes = [8, 32], strides = [1, 1]} : vector<8x128xf32> to vector<8x32xf32>
    %cst_41 = arith.constant 2.000000e+00 : f32
    %179 = vector.broadcast %cst_41 : f32 to vector<8x32xf32>
    %180 = arith.mulf %179, %178 : vector<8x32xf32>
    %cst_42 = arith.constant 1.000000e+00 : f32
    %181 = vector.broadcast %cst_42 : f32 to vector<8x32xf32>
    %182 = arith.subf %180, %181 : vector<8x32xf32>
    %183 = vector.extract_strided_slice %175 {offsets = [0, 96], sizes = [8, 32], strides = [1, 1]} : vector<8x128xf32> to vector<8x32xf32>
    %184 = arith.mulf %177, %164 : vector<8x32xf32>
    %185 = arith.mulf %176, %182 : vector<8x32xf32>
    %186 = arith.addf %184, %185 : vector<8x32xf32>
    %187 = math.tanh %186 : vector<8x32xf32>
    %188 = arith.mulf %183, %187 : vector<8x32xf32>
    %c0_43 = arith.constant 0 : index
    %c0_44 = arith.constant 0 : index
    %189 = vector.load %arg4[%c0_43, %c0_44] : memref<8x64xf32, #tpu.memory_space<vmem>>, vector<8x32xf32>
    tpu.vector_store %arg4[%c0_43, %c0_44], %188 {strides = array<i32>} : memref<8x64xf32, #tpu.memory_space<vmem>>, vector<8x32xf32>,
    %c0_45 = arith.constant 0 : index
    %c32_46 = arith.constant 32 : index
    %190 = vector.load %arg4[%c0_45, %c32_46] : memref<8x64xf32, #tpu.memory_space<vmem>>, vector<8x32xf32>
    tpu.vector_store %arg4[%c0_45, %c32_46], %186 {strides = array<i32>} : memref<8x64xf32, #tpu.memory_space<vmem>>, vector<8x32xf32>,
    %191 = vector.extract_strided_slice %4 {offsets = [0, 0], sizes = [1, 32], strides = [1, 1]} : vector<1x128xf32> to vector<1x32xf32>
    %192 = vector.extract_strided_slice %4 {offsets = [0, 32], sizes = [1, 1], strides = [1, 1]} : vector<1x128xf32> to vector<1x1xf32>
    %193 = vector.broadcast %191 : vector<1x32xf32> to vector<8x32xf32>
    %194 = arith.mulf %188, %193 : vector<8x32xf32>
    %cst_47 = arith.constant dense<0.000000e+00> : vector<8xf32>
    %195 = vector.multi_reduction <add>, %194, %cst_47 [1] : vector<8x32xf32> to vector<8xf32>
    %196 = vector.shape_cast %195 : vector<8xf32> to vector<8x1xf32>
    %197 = vector.broadcast %192 : vector<1x1xf32> to vector<8x1xf32>
    %198 = arith.addf %196, %197 : vector<8x1xf32>
    %199 = arith.subf %198, %7 : vector<8x1xf32>
    %200 = arith.mulf %199, %199 : vector<8x1xf32>
    %201 = vector.shape_cast %200 : vector<8x1xf32> to vector<1x8x1xf32>
    %cst_48 = arith.constant dense<0.000000e+00> : vector<1xf32>
    %202 = vector.multi_reduction <add>, %201, %cst_48 [1, 2] : vector<1x8x1xf32> to vector<1xf32>
    %203 = vector.shape_cast %202 : vector<1xf32> to vector<1x1x1xf32>
    %204 = vector.extract %203[0, 0, 0] : f32 from vector<1x1x1xf32>
    %cst_49 = arith.constant 8.000000e+00 : f32
    %205 = arith.divf %204, %cst_49 : f32
    %c0_50 = arith.constant 0 : index
    %c0_51 = arith.constant 0 : index
    %206 = memref.load %arg3[%c0_50, %c0_51] : memref<1x1xf32, #tpu.memory_space<smem>>
    memref.store %205, %arg3[%c0_50, %c0_51] : memref<1x1xf32, #tpu.memory_space<smem>>
    return
  }
}

</mosaic_0001>

<llo_original>
// kernel: tpu_custom_call.1
$region0: #{tpu_custom_call.1}
  #allocation0 [shape = 'u32[]', space=smem, size = 0x4, offset = 0x4, fixed_abs, tag = 'smem constant byte address 0x4 - core index']
  #allocation1 [shape = 'u32[144,128]{1,0:T(1,128)}', space=vmem, size = 0x12000, scoped, tag = 'internal scratch']
  %s0 = inlined_call_operand.vmem [shape: f32[8,8,2], index: 0, kind: input, shape index: {}]
  %s1 = inlined_call_operand.vmem [shape: f32[48,128], index: 1, kind: input, shape index: {}]
  %s2 = inlined_call_operand.vmem [shape: f32[8,128], index: 2, kind: input, shape index: {}]
  %s3 = inlined_call_operand.hbm [shape: f32[1,1], index: 3, kind: output, shape index: {0}]
  %s4 = inlined_call_operand.hbm [shape: f32[8,64], index: 4, kind: output, shape index: {1}]
  %5 = xla_tuple %s3, %s4
  %s6 = sld [smem:[#allocation0]]
  $region30: #{tpu_custom_call.1} parent=0
    _
  %s8 = ssub.s32 1, %s6
  %s9 = scalar_select 0, %s8, %s6
  $region1: #{tpu_custom_call.1} parent=0
    #allocation2 [shape = 'u8[512]{0}', space=smem, size = 0x200, scoped, tag = 'output window, operand 0, single buffered']
    #allocation3 [shape = 's32[1]{0}', space=sflag, size = 0x4, scoped, tag = 'scoped memory for tpu_custom_call.1']
    #allocation4 [shape = 's32[1]{0}', space=sflag, size = 0x4, scoped, tag = 'scoped memory for tpu_custom_call.1']
    #allocation5 [shape = 'u8[4096]{0}', space=vmem, size = 0x1000, scoped, tag = 'output window, operand 1, single buffered']
    %10 = vsyncpa [#allocation4], 0
    %11 = vsyncpa [#allocation3], 0
    // Predicated region
    $region2: #{tpu_custom_call.1} parent=1 // pred_check
      _
    $region3: #{tpu_custom_call.1} parent=1 // pred_check_branch
      %13 = sbr.rel (0) target = $region5
    $region4: #{tpu_custom_call.1} parent=1 // pred_region
      _
    $region5: #{tpu_custom_call.1} parent=1 // pred_fallthru
      _
    // Predicated region
    $region6: #{tpu_custom_call.1} parent=1 // pred_check
      _
    $region7: #{tpu_custom_call.1} parent=1 // pred_check_branch
      %15 = sbr.rel (0) target = $region9
    $region8: #{tpu_custom_call.1} parent=1 // pred_region
      _
    $region9: #{tpu_custom_call.1} parent=1 // pred_fallthru
      _
    // Predicated region
    $region10: #{tpu_custom_call.1} parent=1 // pred_check
      _
    $region11: #{tpu_custom_call.1} parent=1 // pred_check_branch
      %17 = sbr.rel (0) target = $region13
    $region12: #{tpu_custom_call.1} parent=1 // pred_region
      _
    $region13: #{tpu_custom_call.1} parent=1 // pred_fallthru
      _
    %v19 = vld [vmem:[%s1] sm:$0x3]
    %v20 = vld [vmem:[%s1 + $0x8] sm:$0xff]
    %v21 = vld [vmem:[%s1 + $0x10] sm:$0xff]
    %v22 = vld [vmem:[%s1 + $0x18] sm:$0xff]
    %v23 = vld [vmem:[%s1 + $0x20] sm:$0xff]
    %v24 = vpack.c.bf16 %v21, %v20
    %v25 = vpack.c.bf16 %v23, %v22
    %v26 = vld [vmem:[%s1 + $0x28] sm:$0x1]
    %v27 = vld [vmem:[%s1 + $0x29] sm:$0x1]
    %v28 = vld [vmem:[%s2] sm:$0xff]
    %v29 = vld [vmem:[%s0] sm:$0xff]
    %v30 = vld [vmem:[%s0 + $0x8] sm:$0xff]
    %v31 = vld [vmem:[%s0 + $0x10] sm:$0xff]
    %v32 = vld [vmem:[%s0 + $0x18] sm:$0xff]
    %v33 = vld [vmem:[%s0 + $0x20] sm:$0xff]
    %v34 = vld [vmem:[%s0 + $0x28] sm:$0xff]
    %v35 = vld [vmem:[%s0 + $0x30] sm:$0xff]
    %v36 = vld [vmem:[%s0 + $0x38] sm:$0xff]
    %v37 = vlaneseq
    %v38 = vshrl.u32 %v37, 7
    %v39 = vsub.s32 0, %v38
    %v40 = vrot.slane %v26, %v39
    %vm41 = vcmask 15360
    %v43 = vsel %vm41, %v29, 0
    %v46 = vsel %vm41, %v30, 0
    %v49 = vsel %vm41, %v31, 0
    %v52 = vsel %vm41, %v32, 0
    %v55 = vsel %vm41, %v33, 0
    %v58 = vsel %vm41, %v34, 0
    %v61 = vsel %vm41, %v35, 0
    %v64 = vsel %vm41, %v36, 0
    %vm66 = vcmask 1041408
    %v68 = vsel %vm66, %v19, 0
    %70 = vmatprep.subr.mxu0 0.0
    %71 = vmatpush1.msra.mxu0 %v68
    %72 = vmatprep.subr.mxu0 0.0
    %73 = vmatpush1.msra.mxu0 0.0
    %74 = vmatprep.subr.mxu0 0.0
    %75 = vmatpush1.msra.mxu0 0.0
    %76 = vmatprep.subr.mxu0 0.0
    %77 = vmatpush1.msra.mxu0 0.0
    %78 = vmatprep.subr.mxu0 0.0
    %79 = vmatpush1.msra.mxu0 0.0
    %80 = vmatprep.subr.mxu0 0.0
    %81 = vmatpush1.msra.mxu0 0.0
    %82 = vmatprep.subr.mxu0 0.0
    %83 = vmatpush1.msra.mxu0 0.0
    %84 = vmatprep.subr.mxu0 0.0
    %85 = vmatpush1.msra.mxu0 0.0
    %86 = vmatprep.subr.mxu0 0.0
    %87 = vmatpush1.msra.mxu0 0.0
    %88 = vmatprep.subr.mxu0 0.0
    %89 = vmatpush1.msra.mxu0 0.0
    %90 = vmatprep.subr.mxu0 0.0
    %91 = vmatpush1.msra.mxu0 0.0
    %92 = vmatprep.subr.mxu0 0.0
    %93 = vmatpush1.msra.mxu0 0.0
    %94 = vmatprep.subr.mxu0 0.0
    %95 = vmatpush1.msra.mxu0 0.0
    %96 = vmatprep.subr.mxu0 0.0
    %97 = vmatpush1.msra.mxu0 0.0
    %98 = vmatprep.subr.mxu0 0.0
    %99 = vmatpush1.msra.mxu0 0.0
    %100 = vmatprep.subr.mxu0 0.0
    %101 = vmatpush1.msra.mxu0 0.0
    %102 = vmatprep.subr.mxu0 0.0
    %103 = vmatpush1.msra.mxu0 0.0
    %104 = vmatprep.subr.mxu0 0.0
    %105 = vmatpush1.msra.mxu0 0.0
    %106 = vmatprep.subr.mxu0 0.0
    %107 = vmatpush1.msra.mxu0 0.0
    %108 = vmatprep.subr.mxu0 0.0
    %109 = vmatpush1.msra.mxu0 0.0
    %110 = vmatprep.subr.mxu0 0.0
    %111 = vmatpush1.msra.mxu0 0.0
    %112 = vmatprep.subr.mxu0 0.0
    %113 = vmatpush1.msra.mxu0 0.0
    %114 = vmatprep.subr.mxu0 0.0
    %115 = vmatpush1.msra.mxu0 0.0
    %116 = vmatprep.subr.mxu0 0.0
    %117 = vmatpush1.msra.mxu0 0.0
    %118 = vmatprep.subr.mxu0 0.0
    %119 = vmatpush1.msra.mxu0 0.0
    %120 = vmatprep.subr.mxu0 0.0
    %121 = vmatpush1.msra.mxu0 0.0
    %122 = vmatprep.subr.mxu0 0.0
    %123 = vmatpush1.msra.mxu0 0.0
    %124 = vmatprep.subr.mxu0 0.0
    %125 = vmatpush1.msra.mxu0 0.0
    %126 = vmatprep.subr.mxu0 0.0
    %127 = vmatpush1.msra.mxu0 0.0
    %128 = vmatprep.subr.mxu0 0.0
    %129 = vmatpush1.msra.mxu0 0.0
    %130 = vmatprep.subr.mxu0 0.0
    %131 = vmatpush1.msra.mxu0 0.0
    %132 = vmatprep.subr.mxu0 0.0
    %133 = vmatpush1.msra.mxu0 0.0
    %134 = vmatprep.mubr.f32.mxu0 0.0
    %135 = vmatmul.mubr.f32.gmra.mrb[0].mxu0 %v43
    %v136 = vpop.f32.mrb[0].mxu0
    %v137 = vadd.f32 %v40, %v136
    %v138 = vpop.f32.mrb[0].mxu0
    %139 = vmatprep.mubr.f32.mxu0 0.0
    %140 = vmatmul.mubr.f32.gmra.mrb[0].mxu0 %v46
    %v141 = vpop.f32.mrb[0].mxu0
    %v142 = vadd.f32 %v40, %v141
    %v143 = vpop.f32.mrb[0].mxu0
    %144 = vmatprep.mubr.f32.mxu0 0.0
    %145 = vmatmul.mubr.f32.gmra.mrb[0].mxu0 %v49
    %v146 = vpop.f32.mrb[0].mxu0
    %v147 = vadd.f32 %v40, %v146
    %v148 = vpop.f32.mrb[0].mxu0
    %149 = vmatprep.mubr.f32.mxu0 0.0
    %150 = vmatmul.mubr.f32.gmra.mrb[0].mxu0 %v52
    %v151 = vpop.f32.mrb[0].mxu0
    %v152 = vadd.f32 %v40, %v151
    %v153 = vpop.f32.mrb[0].mxu0
    %154 = vmatprep.mubr.f32.mxu0 0.0
    %155 = vmatmul.mubr.f32.gmra.mrb[0].mxu0 %v55
    %v156 = vpop.f32.mrb[0].mxu0
    %v157 = vadd.f32 %v40, %v156
    %v158 = vpop.f32.mrb[0].mxu0
    %159 = vmatprep.mubr.f32.mxu0 0.0
    %160 = vmatmul.mubr.f32.gmra.mrb[0].mxu0 %v58
    %v161 = vpop.f32.mrb[0].mxu0
    %v162 = vadd.f32 %v40, %v161
    %v163 = vpop.f32.mrb[0].mxu0
    %164 = vmatprep.mubr.f32.mxu0 0.0
    %165 = vmatmul.mubr.f32.gmra.mrb[0].mxu0 %v61
    %v166 = vpop.f32.mrb[0].mxu0
    %v167 = vadd.f32 %v40, %v166
    %v168 = vpop.f32.mrb[0].mxu0
    %169 = vmatprep.mubr.f32.mxu0 0.0
    %170 = vmatmul.mubr.f32.gmra.mrb[0].mxu0 %v64
    %v171 = vpop.f32.mrb[0].mxu0
    %v172 = vadd.f32 %v40, %v171
    %v173 = vpop.f32.mrb[0].mxu0
    %174 = vdwg.mxu0
    %v175 = vpack.c.bf16 %v28, %v28
    %vm176 = vcmask 261120
    %v178 = vsel %vm176, %v175, 0
    %180 = vmatprep.subr.bf16.mxu0 0
    %181 = vmatpush1.bf16.msra.mxu0 %v24
    %182 = vmatprep.subr.bf16.mxu0 0
    %183 = vmatpush1.bf16.msra.mxu0 %v25
    %184 = vmatprep.subr.bf16.mxu0 0
    %185 = vmatpush1.bf16.msra.mxu0 0
    %186 = vmatprep.subr.bf16.mxu0 0
    %187 = vmatpush1.bf16.msra.mxu0 0
    %188 = vmatprep.subr.bf16.mxu0 0
    %189 = vmatpush1.bf16.msra.mxu0 0
    %190 = vmatprep.subr.bf16.mxu0 0
    %191 = vmatpush1.bf16.msra.mxu0 0
    %192 = vmatprep.subr.bf16.mxu0 0
    %193 = vmatpush1.bf16.msra.mxu0 0
    %194 = vmatprep.subr.bf16.mxu0 0
    %195 = vmatpush1.bf16.msra.mxu0 0
    %196 = vmatprep.subr.bf16.mxu0 0
    %197 = vmatpush1.bf16.msra.mxu0 0
    %198 = vmatprep.subr.bf16.mxu0 0
    %199 = vmatpush1.bf16.msra.mxu0 0
    %200 = vmatprep.subr.bf16.mxu0 0
    %201 = vmatpush1.bf16.msra.mxu0 0
    %202 = vmatprep.subr.bf16.mxu0 0
    %203 = vmatpush1.bf16.msra.mxu0 0
    %204 = vmatprep.subr.bf16.mxu0 0
    %205 = vmatpush1.bf16.msra.mxu0 0
    %206 = vmatprep.subr.bf16.mxu0 0
    %207 = vmatpush1.bf16.msra.mxu0 0
    %208 = vmatprep.subr.bf16.mxu0 0
    %209 = vmatpush1.bf16.msra.mxu0 0
    %210 = vmatprep.subr.bf16.mxu0 0
    %211 = vmatpush1.bf16.msra.mxu0 0
    %212 = vmatprep.mubr.bf16.mxu0 0
    %213 = vmatmul.mubr.bf16.gmra.mrb[0].mxu0 %v178
    %v214 = vpop.f32.mrb[0].mxu0
    %v215 = vadd.f32 0.0, %v214
    %v216 = vpop.f32.mrb[0].mxu0
    %v217 = vpop.f32.mrb[0].mxu0
    %v218 = vpop.f32.mrb[0].mxu0
    %219 = vdwg.mxu0
    %v220 = vadd.f32 %v137, %v215
    %v221 = vxor.u32 %v220, 2147483648
    %v222 = vmul.f32 %v221, 1.442695
    %v223 = vpow.pop %v222
    %v224 = vadd.f32 %v223, 1.0
    %v225 = vrcp.pop %v224
    %v226 = vmul.f32 1.0, %v225
    %v227 = vmul.f32 %v226, 2.0
    %v228 = vsub.f32 %v227, 1.0
    %v229 = vmul.f32 %v226, %v28
    %231 = vrot.lane.b32.xlu0 %v228, 64
    %v232 = vpop.permute.xlu0 %231
    %v234 = vmul.f32 %v226, %v232
    %236 = vrot.lane.b32.xlu0 %v234, 32
    %v237 = vpop.permute.xlu0 %236
    %v239 = vadd.f32 %v229, %v237
    %v240 = vtanh.pop %v239
    %242 = vrot.lane.b32.xlu0 %v240, 64
    %v243 = vpop.permute.xlu0 %242
    %v245 = vmul.f32 %v226, %v243
    %v246 = vpack.c.bf16 %v245, %v245
    %248 = vrot.lane.b32.xlu0 %v246, 32
    %v249 = vpop.permute.xlu0 %248
    %v251 = vsel %vm176, %v249, 0
    %253 = vmatprep.subr.bf16.mxu0 0
    %254 = vmatpush1.bf16.msra.mxu0 %v24
    %255 = vmatprep.subr.bf16.mxu0 0
    %256 = vmatpush1.bf16.msra.mxu0 %v25
    %257 = vmatprep.subr.bf16.mxu0 0
    %258 = vmatpush1.bf16.msra.mxu0 0
    %259 = vmatprep.subr.bf16.mxu0 0
    %260 = vmatpush1.bf16.msra.mxu0 0
    %261 = vmatprep.subr.bf16.mxu0 0
    %262 = vmatpush1.bf16.msra.mxu0 0
    %263 = vmatprep.subr.bf16.mxu0 0
    %264 = vmatpush1.bf16.msra.mxu0 0
    %265 = vmatprep.subr.bf16.mxu0 0
    %266 = vmatpush1.bf16.msra.mxu0 0
    %267 = vmatprep.subr.bf16.mxu0 0
    %268 = vmatpush1.bf16.msra.mxu0 0
    %269 = vmatprep.subr.bf16.mxu0 0
    %270 = vmatpush1.bf16.msra.mxu0 0
    %271 = vmatprep.subr.bf16.mxu0 0
    %272 = vmatpush1.bf16.msra.mxu0 0
    %273 = vmatprep.subr.bf16.mxu0 0
    %274 = vmatpush1.bf16.msra.mxu0 0
    %275 = vmatprep.subr.bf16.mxu0 0
    %276 = vmatpush1.bf16.msra.mxu0 0
    %277 = vmatprep.subr.bf16.mxu0 0
    %278 = vmatpush1.bf16.msra.mxu0 0
    %279 = vmatprep.subr.bf16.mxu0 0
    %280 = vmatpush1.bf16.msra.mxu0 0
    %281 = vmatprep.subr.bf16.mxu0 0
    %282 = vmatpush1.bf16.msra.mxu0 0
    %283 = vmatprep.subr.bf16.mxu0 0
    %284 = vmatpush1.bf16.msra.mxu0 0
    %285 = vmatprep.mubr.bf16.mxu0 0
    %286 = vmatmul.mubr.bf16.gmra.mrb[0].mxu0 %v251
    %v287 = vpop.f32.mrb[0].mxu0
    %v288 = vadd.f32 0.0, %v287
    %v289 = vpop.f32.mrb[0].mxu0
    %v290 = vpop.f32.mrb[0].mxu0
    %v291 = vpop.f32.mrb[0].mxu0
    %292 = vdwg.mxu0
    %v293 = vadd.f32 %v142, %v288
    %v294 = vxor.u32 %v293, 2147483648
    %v295 = vmul.f32 %v294, 1.442695
    %v296 = vpow.pop %v295
    %v297 = vadd.f32 %v296, 1.0
    %v298 = vrcp.pop %v297
    %v299 = vmul.f32 1.0, %v298
    %v300 = vmul.f32 %v299, 2.0
    %v301 = vsub.f32 %v300, 1.0
    %v302 = vmul.f32 %v299, %v239
    %304 = vrot.lane.b32.xlu0 %v301, 64
    %v305 = vpop.permute.xlu0 %304
    %v307 = vmul.f32 %v299, %v305
    %309 = vrot.lane.b32.xlu0 %v307, 32
    %v310 = vpop.permute.xlu0 %309
    %v312 = vadd.f32 %v302, %v310
    %v313 = vtanh.pop %v312
    %315 = vrot.lane.b32.xlu0 %v313, 64
    %v316 = vpop.permute.xlu0 %315
    %v318 = vmul.f32 %v299, %v316
    %v319 = vpack.c.bf16 %v318, %v318
    %321 = vrot.lane.b32.xlu0 %v319, 32
    %v322 = vpop.permute.xlu0 %321
    %v324 = vsel %vm176, %v322, 0
    %326 = vmatprep.subr.bf16.mxu0 0
    %327 = vmatpush1.bf16.msra.mxu0 %v24
    %328 = vmatprep.subr.bf16.mxu0 0
    %329 = vmatpush1.bf16.msra.mxu0 %v25
    %330 = vmatprep.subr.bf16.mxu0 0
    %331 = vmatpush1.bf16.msra.mxu0 0
    %332 = vmatprep.subr.bf16.mxu0 0
    %333 = vmatpush1.bf16.msra.mxu0 0
    %334 = vmatprep.subr.bf16.mxu0 0
    %335 = vmatpush1.bf16.msra.mxu0 0
    %336 = vmatprep.subr.bf16.mxu0 0
    %337 = vmatpush1.bf16.msra.mxu0 0
    %338 = vmatprep.subr.bf16.mxu0 0
    %339 = vmatpush1.bf16.msra.mxu0 0
    %340 = vmatprep.subr.bf16.mxu0 0
    %341 = vmatpush1.bf16.msra.mxu0 0
    %342 = vmatprep.subr.bf16.mxu0 0
    %343 = vmatpush1.bf16.msra.mxu0 0
    %344 = vmatprep.subr.bf16.mxu0 0
    %345 = vmatpush1.bf16.msra.mxu0 0
    %346 = vmatprep.subr.bf16.mxu0 0
    %347 = vmatpush1.bf16.msra.mxu0 0
    %348 = vmatprep.subr.bf16.mxu0 0
    %349 = vmatpush1.bf16.msra.mxu0 0
    %350 = vmatprep.subr.bf16.mxu0 0
    %351 = vmatpush1.bf16.msra.mxu0 0
    %352 = vmatprep.subr.bf16.mxu0 0
    %353 = vmatpush1.bf16.msra.mxu0 0
    %354 = vmatprep.subr.bf16.mxu0 0
    %355 = vmatpush1.bf16.msra.mxu0 0
    %356 = vmatprep.subr.bf16.mxu0 0
    %357 = vmatpush1.bf16.msra.mxu0 0
    %358 = vmatprep.mubr.bf16.mxu0 0
    %359 = vmatmul.mubr.bf16.gmra.mrb[0].mxu0 %v324
    %v360 = vpop.f32.mrb[0].mxu0
    %v361 = vadd.f32 0.0, %v360
    %v362 = vpop.f32.mrb[0].mxu0
    %v363 = vpop.f32.mrb[0].mxu0
    %v364 = vpop.f32.mrb[0].mxu0
    %365 = vdwg.mxu0
    %v366 = vadd.f32 %v147, %v361
    %v367 = vxor.u32 %v366, 2147483648
    %v368 = vmul.f32 %v367, 1.442695
    %v369 = vpow.pop %v368
    %v370 = vadd.f32 %v369, 1.0
    %v371 = vrcp.pop %v370
    %v372 = vmul.f32 1.0, %v371
    %v373 = vmul.f32 %v372, 2.0
    %v374 = vsub.f32 %v373, 1.0
    %v375 = vmul.f32 %v372, %v312
    %377 = vrot.lane.b32.xlu0 %v374, 64
    %v378 = vpop.permute.xlu0 %377
    %v380 = vmul.f32 %v372, %v378
    %382 = vrot.lane.b32.xlu0 %v380, 32
    %v383 = vpop.permute.xlu0 %382
    %v385 = vadd.f32 %v375, %v383
    %v386 = vtanh.pop %v385
    %388 = vrot.lane.b32.xlu0 %v386, 64
    %v389 = vpop.permute.xlu0 %388
    %v391 = vmul.f32 %v372, %v389
    %v392 = vpack.c.bf16 %v391, %v391
    %394 = vrot.lane.b32.xlu0 %v392, 32
    %v395 = vpop.permute.xlu0 %394
    %v397 = vsel %vm176, %v395, 0
    %399 = vmatprep.subr.bf16.mxu0 0
    %400 = vmatpush1.bf16.msra.mxu0 %v24
    %401 = vmatprep.subr.bf16.mxu0 0
    %402 = vmatpush1.bf16.msra.mxu0 %v25
    %403 = vmatprep.subr.bf16.mxu0 0
    %404 = vmatpush1.bf16.msra.mxu0 0
    %405 = vmatprep.subr.bf16.mxu0 0
    %406 = vmatpush1.bf16.msra.mxu0 0
    %407 = vmatprep.subr.bf16.mxu0 0
    %408 = vmatpush1.bf16.msra.mxu0 0
    %409 = vmatprep.subr.bf16.mxu0 0
    %410 = vmatpush1.bf16.msra.mxu0 0
    %411 = vmatprep.subr.bf16.mxu0 0
    %412 = vmatpush1.bf16.msra.mxu0 0
    %413 = vmatprep.subr.bf16.mxu0 0
    %414 = vmatpush1.bf16.msra.mxu0 0
    %415 = vmatprep.subr.bf16.mxu0 0
    %416 = vmatpush1.bf16.msra.mxu0 0
    %417 = vmatprep.subr.bf16.mxu0 0
    %418 = vmatpush1.bf16.msra.mxu0 0
    %419 = vmatprep.subr.bf16.mxu0 0
    %420 = vmatpush1.bf16.msra.mxu0 0
    %421 = vmatprep.subr.bf16.mxu0 0
    %422 = vmatpush1.bf16.msra.mxu0 0
    %423 = vmatprep.subr.bf16.mxu0 0
    %424 = vmatpush1.bf16.msra.mxu0 0
    %425 = vmatprep.subr.bf16.mxu0 0
    %426 = vmatpush1.bf16.msra.mxu0 0
    %427 = vmatprep.subr.bf16.mxu0 0
    %428 = vmatpush1.bf16.msra.mxu0 0
    %429 = vmatprep.subr.bf16.mxu0 0
    %430 = vmatpush1.bf16.msra.mxu0 0
    %431 = vmatprep.mubr.bf16.mxu0 0
    %432 = vmatmul.mubr.bf16.gmra.mrb[0].mxu0 %v397
    %v433 = vpop.f32.mrb[0].mxu0
    %v434 = vadd.f32 0.0, %v433
    %v435 = vpop.f32.mrb[0].mxu0
    %v436 = vpop.f32.mrb[0].mxu0
    %v437 = vpop.f32.mrb[0].mxu0
    %438 = vdwg.mxu0
    %v439 = vadd.f32 %v152, %v434
    %v440 = vxor.u32 %v439, 2147483648
    %v441 = vmul.f32 %v440, 1.442695
    %v442 = vpow.pop %v441
    %v443 = vadd.f32 %v442, 1.0
    %v444 = vrcp.pop %v443
    %v445 = vmul.f32 1.0, %v444
    %v446 = vmul.f32 %v445, 2.0
    %v447 = vsub.f32 %v446, 1.0
    %v448 = vmul.f32 %v445, %v385
    %450 = vrot.lane.b32.xlu0 %v447, 64
    %v451 = vpop.permute.xlu0 %450
    %v453 = vmul.f32 %v445, %v451
    %455 = vrot.lane.b32.xlu0 %v453, 32
    %v456 = vpop.permute.xlu0 %455
    %v458 = vadd.f32 %v448, %v456
    %v459 = vtanh.pop %v458
    %461 = vrot.lane.b32.xlu0 %v459, 64
    %v462 = vpop.permute.xlu0 %461
    %v464 = vmul.f32 %v445, %v462
    %v465 = vpack.c.bf16 %v464, %v464
    %467 = vrot.lane.b32.xlu0 %v465, 32
    %v468 = vpop.permute.xlu0 %467
    %v470 = vsel %vm176, %v468, 0
    %472 = vmatprep.subr.bf16.mxu0 0
    %473 = vmatpush1.bf16.msra.mxu0 %v24
    %474 = vmatprep.subr.bf16.mxu0 0
    %475 = vmatpush1.bf16.msra.mxu0 %v25
    %476 = vmatprep.subr.bf16.mxu0 0
    %477 = vmatpush1.bf16.msra.mxu0 0
    %478 = vmatprep.subr.bf16.mxu0 0
    %479 = vmatpush1.bf16.msra.mxu0 0
    %480 = vmatprep.subr.bf16.mxu0 0
    %481 = vmatpush1.bf16.msra.mxu0 0
    %482 = vmatprep.subr.bf16.mxu0 0
    %483 = vmatpush1.bf16.msra.mxu0 0
    %484 = vmatprep.subr.bf16.mxu0 0
    %485 = vmatpush1.bf16.msra.mxu0 0
    %486 = vmatprep.subr.bf16.mxu0 0
    %487 = vmatpush1.bf16.msra.mxu0 0
    %488 = vmatprep.subr.bf16.mxu0 0
    %489 = vmatpush1.bf16.msra.mxu0 0
    %490 = vmatprep.subr.bf16.mxu0 0
    %491 = vmatpush1.bf16.msra.mxu0 0
    %492 = vmatprep.subr.bf16.mxu0 0
    %493 = vmatpush1.bf16.msra.mxu0 0
    %494 = vmatprep.subr.bf16.mxu0 0
    %495 = vmatpush1.bf16.msra.mxu0 0
    %496 = vmatprep.subr.bf16.mxu0 0
    %497 = vmatpush1.bf16.msra.mxu0 0
    %498 = vmatprep.subr.bf16.mxu0 0
    %499 = vmatpush1.bf16.msra.mxu0 0
    %500 = vmatprep.subr.bf16.mxu0 0
    %501 = vmatpush1.bf16.msra.mxu0 0
    %502 = vmatprep.subr.bf16.mxu0 0
    %503 = vmatpush1.bf16.msra.mxu0 0
    %504 = vmatprep.mubr.bf16.mxu0 0
    %505 = vmatmul.mubr.bf16.gmra.mrb[0].mxu0 %v470
    %v506 = vpop.f32.mrb[0].mxu0
    %v507 = vadd.f32 0.0, %v506
    %v508 = vpop.f32.mrb[0].mxu0
    %v509 = vpop.f32.mrb[0].mxu0
    %v510 = vpop.f32.mrb[0].mxu0
    %511 = vdwg.mxu0
    %v512 = vadd.f32 %v157, %v507
    %v513 = vxor.u32 %v512, 2147483648
    %v514 = vmul.f32 %v513, 1.442695
    %v515 = vpow.pop %v514
    %v516 = vadd.f32 %v515, 1.0
    %v517 = vrcp.pop %v516
    %v518 = vmul.f32 1.0, %v517
    %v519 = vmul.f32 %v518, 2.0
    %v520 = vsub.f32 %v519, 1.0
    %v521 = vmul.f32 %v518, %v458
    %523 = vrot.lane.b32.xlu0 %v520, 64
    %v524 = vpop.permute.xlu0 %523
    %v526 = vmul.f32 %v518, %v524
    %528 = vrot.lane.b32.xlu0 %v526, 32
    %v529 = vpop.permute.xlu0 %528
    %v531 = vadd.f32 %v521, %v529
    %v532 = vtanh.pop %v531
    %534 = vrot.lane.b32.xlu0 %v532, 64
    %v535 = vpop.permute.xlu0 %534
    %v537 = vmul.f32 %v518, %v535
    %v538 = vpack.c.bf16 %v537, %v537
    %540 = vrot.lane.b32.xlu0 %v538, 32
    %v541 = vpop.permute.xlu0 %540
    %v543 = vsel %vm176, %v541, 0
    %545 = vmatprep.subr.bf16.mxu0 0
    %546 = vmatpush1.bf16.msra.mxu0 %v24
    %547 = vmatprep.subr.bf16.mxu0 0
    %548 = vmatpush1.bf16.msra.mxu0 %v25
    %549 = vmatprep.subr.bf16.mxu0 0
    %550 = vmatpush1.bf16.msra.mxu0 0
    %551 = vmatprep.subr.bf16.mxu0 0
    %552 = vmatpush1.bf16.msra.mxu0 0
    %553 = vmatprep.subr.bf16.mxu0 0
    %554 = vmatpush1.bf16.msra.mxu0 0
    %555 = vmatprep.subr.bf16.mxu0 0
    %556 = vmatpush1.bf16.msra.mxu0 0
    %557 = vmatprep.subr.bf16.mxu0 0
    %558 = vmatpush1.bf16.msra.mxu0 0
    %559 = vmatprep.subr.bf16.mxu0 0
    %560 = vmatpush1.bf16.msra.mxu0 0
    %561 = vmatprep.subr.bf16.mxu0 0
    %562 = vmatpush1.bf16.msra.mxu0 0
    %563 = vmatprep.subr.bf16.mxu0 0
    %564 = vmatpush1.bf16.msra.mxu0 0
    %565 = vmatprep.subr.bf16.mxu0 0
    %566 = vmatpush1.bf16.msra.mxu0 0
    %567 = vmatprep.subr.bf16.mxu0 0
    %568 = vmatpush1.bf16.msra.mxu0 0
    %569 = vmatprep.subr.bf16.mxu0 0
    %570 = vmatpush1.bf16.msra.mxu0 0
    %571 = vmatprep.subr.bf16.mxu0 0
    %572 = vmatpush1.bf16.msra.mxu0 0
    %573 = vmatprep.subr.bf16.mxu0 0
    %574 = vmatpush1.bf16.msra.mxu0 0
    %575 = vmatprep.subr.bf16.mxu0 0
    %576 = vmatpush1.bf16.msra.mxu0 0
    %577 = vmatprep.mubr.bf16.mxu0 0
    %578 = vmatmul.mubr.bf16.gmra.mrb[0].mxu0 %v543
    %v579 = vpop.f32.mrb[0].mxu0
    %v580 = vadd.f32 0.0, %v579
    %v581 = vpop.f32.mrb[0].mxu0
    %v582 = vpop.f32.mrb[0].mxu0
    %v583 = vpop.f32.mrb[0].mxu0
    %584 = vdwg.mxu0
    %v585 = vadd.f32 %v162, %v580
    %v586 = vxor.u32 %v585, 2147483648
    %v587 = vmul.f32 %v586, 1.442695
    %v588 = vpow.pop %v587
    %v589 = vadd.f32 %v588, 1.0
    %v590 = vrcp.pop %v589
    %v591 = vmul.f32 1.0, %v590
    %v592 = vmul.f32 %v591, 2.0
    %v593 = vsub.f32 %v592, 1.0
    %v594 = vmul.f32 %v591, %v531
    %596 = vrot.lane.b32.xlu0 %v593, 64
    %v597 = vpop.permute.xlu0 %596
    %v599 = vmul.f32 %v591, %v597
    %601 = vrot.lane.b32.xlu0 %v599, 32
    %v602 = vpop.permute.xlu0 %601
    %v604 = vadd.f32 %v594, %v602
    %v605 = vtanh.pop %v604
    %607 = vrot.lane.b32.xlu0 %v605, 64
    %v608 = vpop.permute.xlu0 %607
    %v610 = vmul.f32 %v591, %v608
    %v611 = vpack.c.bf16 %v610, %v610
    %613 = vrot.lane.b32.xlu0 %v611, 32
    %v614 = vpop.permute.xlu0 %613
    %v616 = vsel %vm176, %v614, 0
    %618 = vmatprep.subr.bf16.mxu0 0
    %619 = vmatpush1.bf16.msra.mxu0 %v24
    %620 = vmatprep.subr.bf16.mxu0 0
    %621 = vmatpush1.bf16.msra.mxu0 %v25
    %622 = vmatprep.subr.bf16.mxu0 0
    %623 = vmatpush1.bf16.msra.mxu0 0
    %624 = vmatprep.subr.bf16.mxu0 0
    %625 = vmatpush1.bf16.msra.mxu0 0
    %626 = vmatprep.subr.bf16.mxu0 0
    %627 = vmatpush1.bf16.msra.mxu0 0
    %628 = vmatprep.subr.bf16.mxu0 0
    %629 = vmatpush1.bf16.msra.mxu0 0
    %630 = vmatprep.subr.bf16.mxu0 0
    %631 = vmatpush1.bf16.msra.mxu0 0
    %632 = vmatprep.subr.bf16.mxu0 0
    %633 = vmatpush1.bf16.msra.mxu0 0
    %634 = vmatprep.subr.bf16.mxu0 0
    %635 = vmatpush1.bf16.msra.mxu0 0
    %636 = vmatprep.subr.bf16.mxu0 0
    %637 = vmatpush1.bf16.msra.mxu0 0
    %638 = vmatprep.subr.bf16.mxu0 0
    %639 = vmatpush1.bf16.msra.mxu0 0
    %640 = vmatprep.subr.bf16.mxu0 0
    %641 = vmatpush1.bf16.msra.mxu0 0
    %642 = vmatprep.subr.bf16.mxu0 0
    %643 = vmatpush1.bf16.msra.mxu0 0
    %644 = vmatprep.subr.bf16.mxu0 0
    %645 = vmatpush1.bf16.msra.mxu0 0
    %646 = vmatprep.subr.bf16.mxu0 0
    %647 = vmatpush1.bf16.msra.mxu0 0
    %648 = vmatprep.subr.bf16.mxu0 0
    %649 = vmatpush1.bf16.msra.mxu0 0
    %650 = vmatprep.mubr.bf16.mxu0 0
    %651 = vmatmul.mubr.bf16.gmra.mrb[0].mxu0 %v616
    %v652 = vpop.f32.mrb[0].mxu0
    %v653 = vadd.f32 0.0, %v652
    %v654 = vpop.f32.mrb[0].mxu0
    %v655 = vpop.f32.mrb[0].mxu0
    %v656 = vpop.f32.mrb[0].mxu0
    %657 = vdwg.mxu0
    %v658 = vadd.f32 %v167, %v653
    %v659 = vxor.u32 %v658, 2147483648
    %v660 = vmul.f32 %v659, 1.442695
    %v661 = vpow.pop %v660
    %v662 = vadd.f32 %v661, 1.0
    %v663 = vrcp.pop %v662
    %v664 = vmul.f32 1.0, %v663
    %v665 = vmul.f32 %v664, 2.0
    %v666 = vsub.f32 %v665, 1.0
    %v667 = vmul.f32 %v664, %v604
    %669 = vrot.lane.b32.xlu0 %v666, 64
    %v670 = vpop.permute.xlu0 %669
    %v672 = vmul.f32 %v664, %v670
    %674 = vrot.lane.b32.xlu0 %v672, 32
    %v675 = vpop.permute.xlu0 %674
    %v677 = vadd.f32 %v667, %v675
    %v678 = vtanh.pop %v677
    %680 = vrot.lane.b32.xlu0 %v678, 64
    %v681 = vpop.permute.xlu0 %680
    %v683 = vmul.f32 %v664, %v681
    %v684 = vpack.c.bf16 %v683, %v683
    %686 = vrot.lane.b32.xlu0 %v684, 32
    %v687 = vpop.permute.xlu0 %686
    %v689 = vsel %vm176, %v687, 0
    %691 = vmatprep.subr.bf16.mxu0 0
    %692 = vmatpush1.bf16.msra.mxu0 %v24
    %693 = vmatprep.subr.bf16.mxu0 0
    %694 = vmatpush1.bf16.msra.mxu0 %v25
    %695 = vmatprep.subr.bf16.mxu0 0
    %696 = vmatpush1.bf16.msra.mxu0 0
    %697 = vmatprep.subr.bf16.mxu0 0
    %698 = vmatpush1.bf16.msra.mxu0 0
    %699 = vmatprep.subr.bf16.mxu0 0
    %700 = vmatpush1.bf16.msra.mxu0 0
    %701 = vmatprep.subr.bf16.mxu0 0
    %702 = vmatpush1.bf16.msra.mxu0 0
    %703 = vmatprep.subr.bf16.mxu0 0
    %704 = vmatpush1.bf16.msra.mxu0 0
    %705 = vmatprep.subr.bf16.mxu0 0
    %706 = vmatpush1.bf16.msra.mxu0 0
    %707 = vmatprep.subr.bf16.mxu0 0
    %708 = vmatpush1.bf16.msra.mxu0 0
    %709 = vmatprep.subr.bf16.mxu0 0
    %710 = vmatpush1.bf16.msra.mxu0 0
    %711 = vmatprep.subr.bf16.mxu0 0
    %712 = vmatpush1.bf16.msra.mxu0 0
    %713 = vmatprep.subr.bf16.mxu0 0
    %714 = vmatpush1.bf16.msra.mxu0 0
    %715 = vmatprep.subr.bf16.mxu0 0
    %716 = vmatpush1.bf16.msra.mxu0 0
    %717 = vmatprep.subr.bf16.mxu0 0
    %718 = vmatpush1.bf16.msra.mxu0 0
    %719 = vmatprep.subr.bf16.mxu0 0
    %720 = vmatpush1.bf16.msra.mxu0 0
    %721 = vmatprep.subr.bf16.mxu0 0
    %722 = vmatpush1.bf16.msra.mxu0 0
    %723 = vmatprep.mubr.bf16.mxu0 0
    %724 = vmatmul.mubr.bf16.gmra.mrb[0].mxu0 %v689
    %v725 = vpop.f32.mrb[0].mxu0
    %v726 = vadd.f32 0.0, %v725
    %v727 = vpop.f32.mrb[0].mxu0
    %v728 = vpop.f32.mrb[0].mxu0
    %v729 = vpop.f32.mrb[0].mxu0
    %730 = vdwg.mxu0
    %v731 = vadd.f32 %v172, %v726
    %v732 = vxor.u32 %v731, 2147483648
    %v733 = vmul.f32 %v732, 1.442695
    %v734 = vpow.pop %v733
    %v735 = vadd.f32 %v734, 1.0
    %v736 = vrcp.pop %v735
    %v737 = vmul.f32 1.0, %v736
    %v738 = vmul.f32 %v737, 2.0
    %v739 = vsub.f32 %v738, 1.0
    %v740 = vmul.f32 %v737, %v677
    %742 = vrot.lane.b32.xlu0 %v739, 64
    %v743 = vpop.permute.xlu0 %742
    %v745 = vmul.f32 %v737, %v743
    %747 = vrot.lane.b32.xlu0 %v745, 32
    %v748 = vpop.permute.xlu0 %747
    %v750 = vadd.f32 %v740, %v748
    %v751 = vtanh.pop %v750
    %753 = vrot.lane.b32.xlu0 %v751, 64
    %v754 = vpop.permute.xlu0 %753
    %v756 = vmul.f32 %v737, %v754
    %758 = vrot.lane.b32.xlu0 %v756, 32
    %v759 = vpop.permute.xlu0 %758
    %761 = vst.msk [vmem:[#allocation5] sm:$0xff] %vm176, %v759
    %vm762 = vcmask 523520
    %763 = vst.msk [vmem:[#allocation5] sm:$0xff] %vm762, %v750
    %v764 = vlaneseq
    %v765 = vshrl.u32 %v764, 7
    %v766 = vsub.s32 0, %v765
    %v767 = vrot.slane %v27, %v766
    %769 = vrot.lane.b32.xlu0 %v767, 96
    %v770 = vpop.permute.xlu0 %769
    %v772 = vmul.f32 %v756, %v770
    %774 = vrot.lane.b32.xlu0 %v772, 32
    %v775 = vpop.permute.xlu0 %774
    %v777 = vsel %vm176, %v775, 0.0
    %778 = vadd.xlane.f32.xlu0 %v777
    %v779 = vpop.xlane.xlu0 %778
    %v780 = vadd.f32 %v779, %v767
    %782 = vrot.lane.b32.xlu0 %v28, 96
    %v783 = vpop.permute.xlu0 %782
    %v785 = vsub.f32 %v780, %v783
    %v786 = vmul.f32 %v785, %v785
    %788 = vrot.lane.b32.xlu0 %v786, 96
    %v789 = vpop.permute.xlu0 %788
    %vm791 = vcmask 7168
    %v792 = vsel %vm791, %v789, 0.0
    %793 = vadd.xlane.f32.xlu0 %v792
    %v794 = vpop.xlane.xlu0 %793
    %v795 = vrot.slane %v794, 4
    %v796 = vadd.f32 %v794, %v795
    %v797 = vrot.slane %v796, 2
    %v798 = vadd.f32 %v796, %v797
    %v799 = vrot.slane %v798, 1
    %v800 = vadd.f32 %v798, %v799
    %s801 = vtos %v800
    %v802 = vrcp.pop 8.0
    %s803 = vtos %v802
    %s804 = smul.f32 %s801, %s803
    %s805 = scalar_lea.smem [#allocation2], 0
    %806 = sst [smem:[%s805]] %s804
    // Predicated region
    $region14: #{tpu_custom_call.1} parent=1 // pred_check
      _
    $region15: #{tpu_custom_call.1} parent=1 // pred_check_branch
      %808 = sbr.rel (0) target = $region17
    $region16: #{tpu_custom_call.1} parent=1 // pred_region
      %s810 = ssub.s32 16, 16
      %811 = vsyncadd [#allocation4], %s810
      %814 = dma.smem_to_hbm [#allocation2], 16, %s3, [#allocation4]
    $region17: #{tpu_custom_call.1} parent=1 // pred_fallthru
      _
    // Predicated region
    $region18: #{tpu_custom_call.1} parent=1 // pred_check
      _
    $region19: #{tpu_custom_call.1} parent=1 // pred_check_branch
      %816 = sbr.rel (0) target = $region21
    $region20: #{tpu_custom_call.1} parent=1 // pred_region
      %s818 = ssub.s32 128, 128
      %819 = vsyncadd [#allocation3], %s818
      %s821 = sshll.u32 [#allocation5], 4
      %s822 = int_to_ptr.vmem [resolvable:$true] %s821
      %824 = dma.vmem_to_hbm [thread:$0]  %s822, 128, %s4, [#allocation3]
    $region21: #{tpu_custom_call.1} parent=1 // pred_fallthru
      _
    // Predicated region
    $region22: #{tpu_custom_call.1} parent=1 // pred_check
      _
    $region23: #{tpu_custom_call.1} parent=1 // pred_check_branch
      %826 = sbr.rel (0) target = $region25
    $region24: #{tpu_custom_call.1} parent=1 // pred_region
      %827 = dma.done [#allocation4], 16
    $region25: #{tpu_custom_call.1} parent=1 // pred_fallthru
      _
    // Predicated region
    $region26: #{tpu_custom_call.1} parent=1 // pred_check
      _
    $region27: #{tpu_custom_call.1} parent=1 // pred_check_branch
      %829 = sbr.rel (0) target = $region29
    $region28: #{tpu_custom_call.1} parent=1 // pred_region
      %830 = dma.done [#allocation3], 128
    $region29: #{tpu_custom_call.1} parent=1 // pred_fallthru
      _
    %831 = sfence
    %832 = vsyncpa [#allocation3], 1
    %833 = vsyncpa [#allocation4], 1

</llo_original>
